<compile_context>
chip_gen: v6e
topology: v6e:2x2x1
jax: 0.10.0
libtpu: 0.0.40
codegen_flags: <defaults>
</compile_context>

<pallas_src>
import jax
import jax.numpy as jnp
from jax.experimental import pallas as pl
from jax.experimental.pallas import tpu as pltpu


def _symetric_log_kernel(x_ref, o_ref):
    xf = x_ref[...].astype(jnp.float32)
    p = jnp.log1p(jnp.abs(xf))          # one transcendental per element
    out = jnp.where(xf > 0, p, -p)      # exact torch branch semantics (incl. -0.0 at 0)
    o_ref[...] = out.astype(o_ref.dtype)


def _round_up(a, m):
    return (a + m - 1) // m * m


def _compiler_params(block_bytes):
    # Cover the pipeline footprint (2 x (in + out) blocks) with headroom, but stay
    # within every generation's physical VMEM (v7x: 64 MiB per TC).
    vmem_limit = int(min(64 * 1024 * 1024, max(32 * 1024 * 1024, 8 * block_bytes)))
    return pltpu.CompilerParams(
        dimension_semantics=("parallel",),
        vmem_limit_bytes=vmem_limit,
    )


def _cost_estimate(n, itemsize):
    return pl.CostEstimate(flops=3 * n, transcendentals=n,
                           bytes_accessed=2 * n * itemsize)


def symetric_log(x, *, target_block_bytes=4 * 1024 * 1024):
    """Elementwise symmetric log, matching SymetricLog.forward."""
    orig_shape = x.shape
    dtype = x.dtype
    n = x.size
    if n == 0:
        return x

    itemsize = jnp.dtype(dtype).itemsize
    # dtype-aware sublane multiple: 8 for f32, 16 for bf16/f16, 32 for int8/fp8
    sublane_mult = 8 * max(1, 4 // itemsize)

    flat = x.reshape(-1)

    if n % 128 == 0:
        # ---- Fast path: zero-copy reshape to lane-dense 2-D slabs ----
        lane = 128
        for cand in (1024, 512, 256):
            if n % cand == 0:
                lane = cand
                break
        rows = n // lane
        x2d = flat.reshape(rows, lane)

        target_rows = max(
            sublane_mult,
            (target_block_bytes // (lane * itemsize)) // sublane_mult * sublane_mult)

        if rows > target_rows:
            block_rows = target_rows
        elif rows >= 2 * sublane_mult:
            # Force >= 2 grid steps so both v7x TensorCores stream data.
            block_rows = _round_up((rows + 1) // 2, sublane_mult)
        else:
            block_rows = rows  # equals full dim -> always a legal block shape

        grid = (pl.cdiv(rows, block_rows),)
        block_bytes = block_rows * lane * itemsize

        out2d = pl.pallas_call(
            _symetric_log_kernel,
            out_shape=jax.ShapeDtypeStruct((rows, lane), dtype),
            grid_spec=pltpu.PrefetchScalarGridSpec(
                num_scalar_prefetch=0,
                grid=grid,
                in_specs=[pl.BlockSpec((block_rows, lane), lambda i: (i, 0))],
                out_specs=pl.BlockSpec((block_rows, lane), lambda i: (i, 0)),
            ),
            compiler_params=_compiler_params(block_bytes),
            cost_estimate=_cost_estimate(n, itemsize),
        )(x2d)
        return out2d.reshape(orig_shape)

    # ---- Rare path: n % 128 != 0.  Process the flat 1-D array directly;
    # the partial final block is masked by Pallas (no full-array pad / slice). ----
    max_block_elems = max(1024, (target_block_bytes // itemsize) // 1024 * 1024)
    if n <= max_block_elems:
        block_elems = n          # single full-array block (legal for any n)
    else:
        block_elems = max_block_elems  # multiple of 1024; last block masked
    grid = (pl.cdiv(n, block_elems),)
    block_bytes = block_elems * itemsize

    out = pl.pallas_call(
        _symetric_log_kernel,
        out_shape=jax.ShapeDtypeStruct((n,), dtype),
        grid_spec=pltpu.PrefetchScalarGridSpec(
            num_scalar_prefetch=0,
            grid=grid,
            in_specs=[pl.BlockSpec((block_elems,), lambda i: (i,))],
            out_specs=pl.BlockSpec((block_elems,), lambda i: (i,)),
        ),
        compiler_params=_compiler_params(block_bytes),
        cost_estimate=_cost_estimate(n, itemsize),
    )(flat)
    return out.reshape(orig_shape)


def _symetric_log_ref(x):
    # pure-JAX reference mirroring the PyTorch semantics
    xf = x.astype(jnp.float32)
    out = jnp.where(xf > 0, jnp.log1p(xf), -jnp.log1p(-xf))
    return out.astype(x.dtype)


if __name__ == "__main__":
    key = jax.random.PRNGKey(0)
    # NCHW-like input consistent with a generic elementwise module
    x = jax.random.normal(key, (2, 4, 16, 16), dtype=jnp.float32) * 3.0

    out = jax.block_until_ready(symetric_log(x))
    ref = _symetric_log_ref(x)
    assert out.shape == x.shape and out.dtype == x.dtype
    assert jnp.allclose(out, ref, atol=1e-6, rtol=1e-6)

    # Rare path: element count not a multiple of 128 (exercises the no-pad 1-D path).
    x_odd = jax.random.normal(jax.random.PRNGKey(1), (5, 7, 13), dtype=jnp.float32) * 2.0
    out_odd = jax.block_until_ready(symetric_log(x_odd))
    assert out_odd.shape == x_odd.shape and out_odd.dtype == x_odd.dtype
    assert jnp.allclose(out_odd, _symetric_log_ref(x_odd), atol=1e-6, rtol=1e-6)

    print("KERNEL_OK")
</pallas_src>

<mosaic_0001>
module attributes {stable_mosaic.version = 11 : i64} {
  func.func @_symetric_log_kernel(%arg0: i32, %arg1: memref<2x1024xf32, #tpu.memory_space<vmem>>, %arg2: memref<2x1024xf32, #tpu.memory_space<vmem>>) attributes {dimension_semantics = [#tpu.dimension_semantics<parallel>], iteration_bounds = array<i64: 1>, scalar_prefetch = 0 : i64, scratch_operands = 0 : i64, tpu.core_type = #tpu.core_type<tc>, window_params = [{transform_indices = @transform_0, window_bounds = array<i64: 2, 1024>}, {transform_indices = @transform_1, window_bounds = array<i64: 2, 1024>}]} {
    %c0 = arith.constant 0 : index
    %c0_0 = arith.constant 0 : index
    %0 = vector.load %arg1[%c0, %c0_0] : memref<2x1024xf32, #tpu.memory_space<vmem>>, vector<2x1024xf32>
    %1 = math.absf %0 : vector<2x1024xf32>
    %2 = math.log1p %1 : vector<2x1024xf32>
    %cst = arith.constant 0.000000e+00 : f32
    %3 = vector.broadcast %cst : f32 to vector<2x1024xf32>
    %4 = arith.cmpf ogt, %0, %3 : vector<2x1024xf32>
    %cst_1 = arith.constant 0.000000e+00 : f32
    %5 = vector.broadcast %cst_1 : f32 to vector<2x1024xf32>
    %6 = arith.subf %5, %2 : vector<2x1024xf32>
    %7 = arith.select %4, %2, %6 : vector<2x1024xi1>, vector<2x1024xf32>
    %c0_2 = arith.constant 0 : index
    %c0_3 = arith.constant 0 : index
    %8 = vector.load %arg2[%c0_2, %c0_3] : memref<2x1024xf32, #tpu.memory_space<vmem>>, vector<2x1024xf32>
    tpu.vector_store %arg2[%c0_2, %c0_3], %7 {strides = array<i32>} : memref<2x1024xf32, #tpu.memory_space<vmem>>, vector<2x1024xf32>,
    return
  }
  func.func @transform_0(%arg0: i32) -> (i32, i32) {
    %c0_i32 = arith.constant 0 : i32
    %c0_i32_0 = arith.constant 0 : i32
    return %arg0, %c0_i32 : i32, i32
  }
  func.func @transform_1(%arg0: i32) -> (i32, i32) {
    %c0_i32 = arith.constant 0 : i32
    %c0_i32_0 = arith.constant 0 : i32
    return %arg0, %c0_i32 : i32, i32
  }
}

</mosaic_0001>

<llo_original>
// kernel: tpu_custom_call.1
$region0: #{tpu_custom_call.1}
  #allocation0 [shape = 'u32[]', space=smem, size = 0x4, offset = 0x4, fixed_abs, tag = 'smem constant byte address 0x4 - core index']
  #allocation1 [shape = 'u32[144,128]{1,0:T(1,128)}', space=vmem, size = 0x12000, scoped, tag = 'internal scratch']
  %s0 = inlined_call_operand.hbm [shape: f32[2,1024], index: 0, kind: input, shape index: {}]
  %s1 = inlined_call_operand.hbm [shape: f32[2,1024], index: 1, kind: output, shape index: {}]
  %s2 = sld [smem:[#allocation0]]
  $region18: #{tpu_custom_call.1} parent=0
    _
  %s4 = ssub.s32 1, %s2
  %s5 = scalar_select 0, %s4, %s2
  $region1: #{tpu_custom_call.1} parent=0
    #allocation2 [shape = 'u8[8192]{0}', space=vmem, size = 0x2000, scoped, tag = 'input window, operand 0, single buffered']
    #allocation3 [shape = 's32[1]{0}', space=sflag, size = 0x4, scoped, tag = 'scoped memory for tpu_custom_call.1']
    #allocation4 [shape = 's32[1]{0}', space=sflag, size = 0x4, scoped, tag = 'scoped memory for tpu_custom_call.1']
    #allocation5 [shape = 'u8[8192]{0}', space=vmem, size = 0x2000, scoped, tag = 'output window, operand 0, single buffered']
    %6 = vsyncpa [#allocation3], 0
    %7 = vsyncpa [#allocation4], 0
    // Predicated region
    $region2: #{tpu_custom_call.1} parent=1 // pred_check
      _
    $region3: #{tpu_custom_call.1} parent=1 // pred_check_branch
      %9 = sbr.rel (0) target = $region5
    $region4: #{tpu_custom_call.1} parent=1 // pred_region
      %s11 = ssub.s32 256, 256
      %12 = vsyncadd [#allocation3], %s11
      %s14 = sshll.u32 [#allocation2], 4
      %s15 = int_to_ptr.vmem [resolvable:$true] %s14
      %17 = dma.hbm_to_vmem [thread:$0]  %s0, 256, %s15, [#allocation3]
    $region5: #{tpu_custom_call.1} parent=1 // pred_fallthru
      _
    // Predicated region
    $region6: #{tpu_custom_call.1} parent=1 // pred_check
      _
    $region7: #{tpu_custom_call.1} parent=1 // pred_check_branch
      %19 = sbr.rel (0) target = $region9
    $region8: #{tpu_custom_call.1} parent=1 // pred_region
      %20 = dma.done [#allocation3], 256
    $region9: #{tpu_custom_call.1} parent=1 // pred_fallthru
      _
    %v21 = vld [vmem:[#allocation2] sm:$0xff]
    %v22 = vld [vmem:[#allocation2 + $0x8] sm:$0xff]
    %v23 = vand.u32 2147483647, %v21
    %v24 = vand.u32 2147483647, %v22
    %v25 = vadd.f32 %v23, 1.0
    %v26 = vlog2.pop %v25
    %v27 = vmul.f32 %v26, 0.6931472
    %v28 = vmul.f32 -0.5, %v23
    %v29 = vadd.f32 %v28, 1.0
    %v30 = vmul.f32 %v29, %v23
    %v31 = vand.u32 2147483647, %v23
    %vm32 = vcmp.lt.f32.partialorder %v31, 0.0004427343
    %v33 = vsel %vm32, %v30, %v27
    %v34 = vadd.f32 %v24, 1.0
    %v35 = vlog2.pop %v34
    %v36 = vmul.f32 %v35, 0.6931472
    %v37 = vmul.f32 -0.5, %v24
    %v38 = vadd.f32 %v37, 1.0
    %v39 = vmul.f32 %v38, %v24
    %v40 = vand.u32 2147483647, %v24
    %vm41 = vcmp.lt.f32.partialorder %v40, 0.0004427343
    %v42 = vsel %vm41, %v39, %v36
    %vm43 = vcmp.gt.f32.partialorder %v21, 0.0
    %vm44 = vcmp.gt.f32.partialorder %v22, 0.0
    %v45 = vsub.f32 0.0, %v33
    %v46 = vsub.f32 0.0, %v42
    %v47 = vsel %vm43, %v33, %v45
    %v48 = vsel %vm44, %v42, %v46
    %49 = vst [vmem:[#allocation5] sm:$0xff] %v47
    %50 = vst [vmem:[#allocation5 + $0x8] sm:$0xff] %v48
    // Predicated region
    $region10: #{tpu_custom_call.1} parent=1 // pred_check
      _
    $region11: #{tpu_custom_call.1} parent=1 // pred_check_branch
      %52 = sbr.rel (0) target = $region13
    $region12: #{tpu_custom_call.1} parent=1 // pred_region
      %s54 = ssub.s32 256, 256
      %55 = vsyncadd [#allocation4], %s54
      %s57 = sshll.u32 [#allocation5], 4
      %s58 = int_to_ptr.vmem [resolvable:$true] %s57
      %60 = dma.vmem_to_hbm [thread:$0]  %s58, 256, %s1, [#allocation4]
    $region13: #{tpu_custom_call.1} parent=1 // pred_fallthru
      _
    // Predicated region
    $region14: #{tpu_custom_call.1} parent=1 // pred_check
      _
    $region15: #{tpu_custom_call.1} parent=1 // pred_check_branch
      %62 = sbr.rel (0) target = $region17
    $region16: #{tpu_custom_call.1} parent=1 // pred_region
      %63 = dma.done [#allocation4], 256
    $region17: #{tpu_custom_call.1} parent=1 // pred_fallthru
      _
    %64 = vsyncpa [#allocation3], 1
    %65 = vsyncpa [#allocation4], 1

</llo_original>
